<compile_context>
chip_gen: v7x
topology: tpu7x:2x2x1
jax: 0.10.0
libtpu: 0.0.40
codegen_flags: <defaults>
</compile_context>

<pallas_src>
import functools

import jax
import jax.numpy as jnp
from jax.experimental import pallas as pl
from jax.experimental.pallas import tpu as pltpu

LANE = 128
SUBLANE = 8


def _round_up(x, m):
    return (x + m - 1) // m * m


def _sigmoid(z):
    # Exact sigmoid with a single EUP transcendental (tanh); the mul/add ride
    # the VALU which has slack.  sigmoid(z) = 0.5*tanh(0.5*z) + 0.5
    return 0.5 * jnp.tanh(0.5 * z) + 0.5


def _fused_mlp_kernel(x_ref, *refs, num_layers):
    """x_ref: [TB, Pin] f32.  refs = (w0, b0, w1, b1, ..., w_{L-1}, b_{L-1}, o_ref).

    w_l: [Pin_l, Pout_l] bf16 (constant index_map -> VMEM-resident across the grid)
    b_l: [1, Pout_l]     f32
    o_ref: [TB, Pout_last] f32

    The layer loop is unrolled at trace time; the activation stays in vregs/VMEM
    between layers (no HBM round-trips, single kernel launch).  Zero padding is
    exact: padded weight rows are zero, so the phantom sigmoid(0)=0.5 values in
    padded activation columns contribute nothing to real output columns.
    """
    o_ref = refs[-1]
    x = x_ref[...]                                           # f32 [TB, Pin]
    for layer in range(num_layers):
        w = refs[2 * layer][...]                             # bf16 [Pi, Po]
        b = refs[2 * layer + 1][...]                         # f32  [1, Po]
        # bf16 operands feed the native MXU path; accumulate in f32.
        z = jnp.dot(x.astype(jnp.bfloat16), w,
                    preferred_element_type=jnp.float32) + b
        x = _sigmoid(z)
        if layer == num_layers - 1:
            # Final layer applies Sigmoid twice (matches the PyTorch module).
            x = _sigmoid(x)
    o_ref[...] = x.astype(o_ref.dtype)


def fused_mlp_forward(x_pad, w_pads, b_pads, tile_b):
    """x_pad: [Bp, Pin] f32; w_pads/b_pads: per-layer padded params -> [Bp, Pout] f32."""
    Bp, p_in = x_pad.shape
    num_layers = len(w_pads)
    p_out = w_pads[-1].shape[1]
    assert Bp % tile_b == 0
    grid = (Bp // tile_b,)

    const_map = lambda i: (0, 0)  # weights/biases: same block every step -> DMA'd once
    in_specs = [pl.BlockSpec((tile_b, p_in), lambda i: (i, 0))]
    flat_wb = []
    for w, b in zip(w_pads, b_pads):
        pi, po = w.shape
        in_specs.append(pl.BlockSpec((pi, po), const_map))
        in_specs.append(pl.BlockSpec((1, po), const_map))
        flat_wb.extend((w, b))
    out_specs = pl.BlockSpec((tile_b, p_out), lambda i: (i, 0))

    # VMEM budget from actual resident buffers: weights/biases (x2 for pipelining
    # buffers), double-buffered x/o tiles, and the live unrolled-layer activations,
    # with 2x headroom.  Capped well below v7x's 64 MiB physical VMEM.
    wb_bytes = sum(w.size * w.dtype.itemsize + b.size * b.dtype.itemsize
                   for w, b in zip(w_pads, b_pads))
    max_p = max([p_in] + [w.shape[1] for w in w_pads])
    act_bytes = (2 * tile_b * p_in * 4 + 2 * tile_b * p_out * 4
                 + 4 * tile_b * max_p * 4)
    vmem_limit = int(min(max(2 * (2 * wb_bytes + act_bytes), 8 << 20), 48 << 20))

    flops = 2 * Bp * sum(w.shape[0] * w.shape[1] for w in w_pads)
    transcendentals = Bp * (sum(w.shape[1] for w in w_pads) + p_out)
    bytes_accessed = x_pad.size * 4 + wb_bytes + Bp * p_out * 4
    cost = pl.CostEstimate(flops=flops, transcendentals=transcendentals,
                           bytes_accessed=bytes_accessed)

    kernel = functools.partial(_fused_mlp_kernel, num_layers=num_layers)
    return pl.pallas_call(
        kernel,
        out_shape=jax.ShapeDtypeStruct((Bp, p_out), jnp.float32),
        grid=grid,
        in_specs=in_specs,
        out_specs=out_specs,
        compiler_params=pltpu.CompilerParams(
            dimension_semantics=("parallel",),
            vmem_limit_bytes=vmem_limit,
        ),
        cost_estimate=cost,
    )(x_pad, *flat_wb)


def _mlp_forward(x, w_pads, b_pads, *, input_size, output_size, tile_b_max=256):
    """Pad -> fused pallas_call -> slice.  Intended to run under jax.jit."""
    B, K = x.shape
    p_in = w_pads[0].shape[0]
    Bp = max(_round_up(B, SUBLANE), SUBLANE)
    if Bp > tile_b_max:
        tile_b = tile_b_max
        Bp = _round_up(Bp, tile_b)
    else:
        tile_b = Bp
    x_pad = jnp.zeros((Bp, p_in), jnp.float32).at[:B, :K].set(x)
    out_pad = fused_mlp_forward(x_pad, w_pads, b_pads, tile_b)
    return out_pad[:B, :output_size]


class ANNClassifierPallas:
    """JAX/Pallas port of ANNClassifier (Sigmoid activation, dropout=0.0 == identity)."""

    def __init__(self, input_size, output_size, layer_sizes=(), key=None):
        self.input_size = int(input_size)
        self.output_size = int(output_size)
        self.layer_sizes = tuple(int(s) for s in layer_sizes)
        sizes = [self.input_size, *self.layer_sizes, self.output_size]
        if key is None:
            key = jax.random.PRNGKey(0)

        # Raw (unpadded, f32) params, torch.nn.Linear-style init:
        # uniform(-1/sqrt(fan_in), 1/sqrt(fan_in)).  Stored as W.T ([in, out]) so
        # the kernel computes a plain x @ W matmul.
        self.params = []
        for fan_in, fan_out in zip(sizes[:-1], sizes[1:]):
            key, wk, bk = jax.random.split(key, 3)
            bound = 1.0 / float(fan_in) ** 0.5
            w = jax.random.uniform(wk, (fan_in, fan_out), jnp.float32, -bound, bound)
            b = jax.random.uniform(bk, (1, fan_out), jnp.float32, -bound, bound)
            self.params.append((w, b))

        # Per-layer lane-dense padded copies, built ONCE on the host.
        # Weights in bf16 (native MXU dtype on v5e/v6e/v7x, half the HBM traffic);
        # biases stay f32 for the f32 VPU/EUP epilogue.
        w_pads, b_pads = [], []
        for w, b in self.params:
            pi = _round_up(w.shape[0], LANE)
            po = _round_up(w.shape[1], LANE)
            wp = jnp.zeros((pi, po), jnp.float32).at[: w.shape[0], : w.shape[1]].set(w)
            bp = jnp.zeros((1, po), jnp.float32).at[:, : b.shape[1]].set(b)
            w_pads.append(wp.astype(jnp.bfloat16))
            b_pads.append(bp)
        self._w_pads = tuple(w_pads)
        self._b_pads = tuple(b_pads)

        # TODO(synk): dropout with p>0 (training mode) not implemented; the module's
        # default p=0.0 is an identity at inference, which is what we implement.

        self._forward = jax.jit(
            functools.partial(
                _mlp_forward,
                input_size=self.input_size,
                output_size=self.output_size,
            )
        )

    def __call__(self, data):
        x = jnp.asarray(data, jnp.float32)
        assert x.ndim == 2 and x.shape[1] == self.input_size
        return self._forward(x, self._w_pads, self._b_pads)


def _reference_forward(model, data):
    """Pure-JAX reference with exact f32 math, using the unpadded params."""
    x = jnp.asarray(data, jnp.float32)
    for w, b in model.params[:-1]:
        x = jax.nn.sigmoid(x @ w + b)
    w, b = model.params[-1]
    return jax.nn.sigmoid(jax.nn.sigmoid(x @ w + b))


if __name__ == "__main__":
    key = jax.random.PRNGKey(0)
    k_in, k_model = jax.random.split(key)

    batch, input_size, output_size = 2, 16, 8
    layer_sizes = (32, 32)

    x = jax.random.normal(k_in, (batch, input_size), jnp.float32)

    model = ANNClassifierPallas(input_size, output_size, layer_sizes, key=k_model)

    out = jax.block_until_ready(model(x))
    ref = _reference_forward(model, x)

    assert out.shape == (batch, output_size)
    # Tolerance covers the bf16 weight/activation cast at the MXU dot (~2^-9 rel
    # per operand, damped by sigmoid slope <= 0.25); the sigmoid itself (tanh
    # formulation) is exact.
    assert jnp.allclose(out, ref, atol=1e-2, rtol=1e-2), (
        f"max abs diff {jnp.max(jnp.abs(out - ref))}"
    )

    print("KERNEL_OK")
</pallas_src>

<mosaic_0001>
module attributes {stable_mosaic.version = 11 : i64} {
  func.func @_fused_mlp_kernel(%arg0: i32, %arg1: memref<8x128xf32, #tpu.memory_space<vmem>>, %arg2: memref<128x128xbf16, #tpu.memory_space<vmem>>, %arg3: memref<1x128xf32, #tpu.memory_space<vmem>>, %arg4: memref<128x128xbf16, #tpu.memory_space<vmem>>, %arg5: memref<1x128xf32, #tpu.memory_space<vmem>>, %arg6: memref<128x128xbf16, #tpu.memory_space<vmem>>, %arg7: memref<1x128xf32, #tpu.memory_space<vmem>>, %arg8: memref<8x128xf32, #tpu.memory_space<vmem>>) attributes {dimension_semantics = [#tpu.dimension_semantics<parallel>], iteration_bounds = array<i64: 1>, scalar_prefetch = 0 : i64, scratch_operands = 0 : i64, tpu.core_type = #tpu.core_type<tc>, window_params = [{transform_indices = @transform_0, window_bounds = array<i64: 8, 128>}, {pipeline_mode = #tpu.pipeline_mode<synchronous>, transform_indices = @transform_1, window_bounds = array<i64: 128, 128>}, {pipeline_mode = #tpu.pipeline_mode<synchronous>, transform_indices = @transform_2, window_bounds = array<i64: 1, 128>}, {pipeline_mode = #tpu.pipeline_mode<synchronous>, transform_indices = @transform_3, window_bounds = array<i64: 128, 128>}, {pipeline_mode = #tpu.pipeline_mode<synchronous>, transform_indices = @transform_4, window_bounds = array<i64: 1, 128>}, {pipeline_mode = #tpu.pipeline_mode<synchronous>, transform_indices = @transform_5, window_bounds = array<i64: 128, 128>}, {pipeline_mode = #tpu.pipeline_mode<synchronous>, transform_indices = @transform_6, window_bounds = array<i64: 1, 128>}, {transform_indices = @transform_7, window_bounds = array<i64: 8, 128>}]} {
    %c0 = arith.constant 0 : index
    %c0_0 = arith.constant 0 : index
    %0 = vector.load %arg1[%c0, %c0_0] : memref<8x128xf32, #tpu.memory_space<vmem>>, vector<8x128xf32>
    %c0_1 = arith.constant 0 : index
    %c0_2 = arith.constant 0 : index
    %1 = vector.load %arg2[%c0_1, %c0_2] : memref<128x128xbf16, #tpu.memory_space<vmem>>, vector<128x128xbf16>
    %c0_3 = arith.constant 0 : index
    %c0_4 = arith.constant 0 : index
    %2 = vector.load %arg3[%c0_3, %c0_4] : memref<1x128xf32, #tpu.memory_space<vmem>>, vector<1x128xf32>
    %3 = arith.truncf %0 : vector<8x128xf32> to vector<8x128xbf16>
    %cst = arith.constant dense<0.000000e+00> : vector<8x128xf32>
    %4 = tpu.matmul %3, %1, %cst {dimension_numbers = #tpu.dot_dimension_numbers<[1], [0], [0], [1], [0, 0, 1, 1], [], []>} : vector<8x128xbf16>, vector<128x128xbf16>, vector<8x128xf32> -> vector<8x128xf32>
    %5 = vector.broadcast %2 : vector<1x128xf32> to vector<8x128xf32>
    %6 = arith.addf %4, %5 : vector<8x128xf32>
    %cst_5 = arith.constant 5.000000e-01 : f32
    %7 = vector.broadcast %cst_5 : f32 to vector<8x128xf32>
    %8 = arith.mulf %7, %6 : vector<8x128xf32>
    %9 = math.tanh %8 : vector<8x128xf32>
    %cst_6 = arith.constant 5.000000e-01 : f32
    %10 = vector.broadcast %cst_6 : f32 to vector<8x128xf32>
    %11 = arith.mulf %10, %9 : vector<8x128xf32>
    %cst_7 = arith.constant 5.000000e-01 : f32
    %12 = vector.broadcast %cst_7 : f32 to vector<8x128xf32>
    %13 = arith.addf %11, %12 : vector<8x128xf32>
    %c0_8 = arith.constant 0 : index
    %c0_9 = arith.constant 0 : index
    %14 = vector.load %arg4[%c0_8, %c0_9] : memref<128x128xbf16, #tpu.memory_space<vmem>>, vector<128x128xbf16>
    %c0_10 = arith.constant 0 : index
    %c0_11 = arith.constant 0 : index
    %15 = vector.load %arg5[%c0_10, %c0_11] : memref<1x128xf32, #tpu.memory_space<vmem>>, vector<1x128xf32>
    %16 = arith.truncf %13 : vector<8x128xf32> to vector<8x128xbf16>
    %cst_12 = arith.constant dense<0.000000e+00> : vector<8x128xf32>
    %17 = tpu.matmul %16, %14, %cst_12 {dimension_numbers = #tpu.dot_dimension_numbers<[1], [0], [0], [1], [0, 0, 1, 1], [], []>} : vector<8x128xbf16>, vector<128x128xbf16>, vector<8x128xf32> -> vector<8x128xf32>
    %18 = vector.broadcast %15 : vector<1x128xf32> to vector<8x128xf32>
    %19 = arith.addf %17, %18 : vector<8x128xf32>
    %cst_13 = arith.constant 5.000000e-01 : f32
    %20 = vector.broadcast %cst_13 : f32 to vector<8x128xf32>
    %21 = arith.mulf %20, %19 : vector<8x128xf32>
    %22 = math.tanh %21 : vector<8x128xf32>
    %cst_14 = arith.constant 5.000000e-01 : f32
    %23 = vector.broadcast %cst_14 : f32 to vector<8x128xf32>
    %24 = arith.mulf %23, %22 : vector<8x128xf32>
    %cst_15 = arith.constant 5.000000e-01 : f32
    %25 = vector.broadcast %cst_15 : f32 to vector<8x128xf32>
    %26 = arith.addf %24, %25 : vector<8x128xf32>
    %c0_16 = arith.constant 0 : index
    %c0_17 = arith.constant 0 : index
    %27 = vector.load %arg6[%c0_16, %c0_17] : memref<128x128xbf16, #tpu.memory_space<vmem>>, vector<128x128xbf16>
    %c0_18 = arith.constant 0 : index
    %c0_19 = arith.constant 0 : index
    %28 = vector.load %arg7[%c0_18, %c0_19] : memref<1x128xf32, #tpu.memory_space<vmem>>, vector<1x128xf32>
    %29 = arith.truncf %26 : vector<8x128xf32> to vector<8x128xbf16>
    %cst_20 = arith.constant dense<0.000000e+00> : vector<8x128xf32>
    %30 = tpu.matmul %29, %27, %cst_20 {dimension_numbers = #tpu.dot_dimension_numbers<[1], [0], [0], [1], [0, 0, 1, 1], [], []>} : vector<8x128xbf16>, vector<128x128xbf16>, vector<8x128xf32> -> vector<8x128xf32>
    %31 = vector.broadcast %28 : vector<1x128xf32> to vector<8x128xf32>
    %32 = arith.addf %30, %31 : vector<8x128xf32>
    %cst_21 = arith.constant 5.000000e-01 : f32
    %33 = vector.broadcast %cst_21 : f32 to vector<8x128xf32>
    %34 = arith.mulf %33, %32 : vector<8x128xf32>
    %35 = math.tanh %34 : vector<8x128xf32>
    %cst_22 = arith.constant 5.000000e-01 : f32
    %36 = vector.broadcast %cst_22 : f32 to vector<8x128xf32>
    %37 = arith.mulf %36, %35 : vector<8x128xf32>
    %cst_23 = arith.constant 5.000000e-01 : f32
    %38 = vector.broadcast %cst_23 : f32 to vector<8x128xf32>
    %39 = arith.addf %37, %38 : vector<8x128xf32>
    %cst_24 = arith.constant 5.000000e-01 : f32
    %40 = vector.broadcast %cst_24 : f32 to vector<8x128xf32>
    %41 = arith.mulf %40, %39 : vector<8x128xf32>
    %42 = math.tanh %41 : vector<8x128xf32>
    %cst_25 = arith.constant 5.000000e-01 : f32
    %43 = vector.broadcast %cst_25 : f32 to vector<8x128xf32>
    %44 = arith.mulf %43, %42 : vector<8x128xf32>
    %cst_26 = arith.constant 5.000000e-01 : f32
    %45 = vector.broadcast %cst_26 : f32 to vector<8x128xf32>
    %46 = arith.addf %44, %45 : vector<8x128xf32>
    %c0_27 = arith.constant 0 : index
    %c0_28 = arith.constant 0 : index
    %47 = vector.load %arg8[%c0_27, %c0_28] : memref<8x128xf32, #tpu.memory_space<vmem>>, vector<8x128xf32>
    tpu.vector_store %arg8[%c0_27, %c0_28], %46 {strides = array<i32>} : memref<8x128xf32, #tpu.memory_space<vmem>>, vector<8x128xf32>,
    return
  }
  func.func @transform_0(%arg0: i32) -> (i32, i32) {
    %c0_i32 = arith.constant 0 : i32
    %c0_i32_0 = arith.constant 0 : i32
    return %arg0, %c0_i32 : i32, i32
  }
  func.func @transform_1(%arg0: i32) -> (i32, i32) {
    %c0_i32 = arith.constant 0 : i32
    %c0_i32_0 = arith.constant 0 : i32
    %c0_i32_1 = arith.constant 0 : i32
    return %c0_i32, %c0_i32_0 : i32, i32
  }
  func.func @transform_2(%arg0: i32) -> (i32, i32) {
    %c0_i32 = arith.constant 0 : i32
    %c0_i32_0 = arith.constant 0 : i32
    %c0_i32_1 = arith.constant 0 : i32
    return %c0_i32, %c0_i32_0 : i32, i32
  }
  func.func @transform_3(%arg0: i32) -> (i32, i32) {
    %c0_i32 = arith.constant 0 : i32
    %c0_i32_0 = arith.constant 0 : i32
    %c0_i32_1 = arith.constant 0 : i32
    return %c0_i32, %c0_i32_0 : i32, i32
  }
  func.func @transform_4(%arg0: i32) -> (i32, i32) {
    %c0_i32 = arith.constant 0 : i32
    %c0_i32_0 = arith.constant 0 : i32
    %c0_i32_1 = arith.constant 0 : i32
    return %c0_i32, %c0_i32_0 : i32, i32
  }
  func.func @transform_5(%arg0: i32) -> (i32, i32) {
    %c0_i32 = arith.constant 0 : i32
    %c0_i32_0 = arith.constant 0 : i32
    %c0_i32_1 = arith.constant 0 : i32
    return %c0_i32, %c0_i32_0 : i32, i32
  }
  func.func @transform_6(%arg0: i32) -> (i32, i32) {
    %c0_i32 = arith.constant 0 : i32
    %c0_i32_0 = arith.constant 0 : i32
    %c0_i32_1 = arith.constant 0 : i32
    return %c0_i32, %c0_i32_0 : i32, i32
  }
  func.func @transform_7(%arg0: i32) -> (i32, i32) {
    %c0_i32 = arith.constant 0 : i32
    %c0_i32_0 = arith.constant 0 : i32
    return %arg0, %c0_i32 : i32, i32
  }
}

</mosaic_0001>

<llo_original>
// kernel: _mlp_forward.1
$region0: #{_mlp_forward.1}
  #allocation0 [shape = 'u32[]', space=smem, size = 0x4, offset = 0x4, fixed_abs, tag = 'smem constant byte address 0x4 - core index']
  #allocation1 [shape = 'u32[144,128]{1,0:T(1,128)}', space=vmem, size = 0x12000, scoped, tag = 'internal scratch']
  %s0 = inlined_call_operand.vmem [shape: f32[8,128], index: 0, kind: input, shape index: {}]
  %s1 = inlined_call_operand.hbm [shape: bf16[128,128], index: 1, kind: input, shape index: {}]
  %s2 = inlined_call_operand.vmem [shape: f32[1,128], index: 2, kind: input, shape index: {}]
  %s3 = inlined_call_operand.hbm [shape: bf16[128,128], index: 3, kind: input, shape index: {}]
  %s4 = inlined_call_operand.vmem [shape: f32[1,128], index: 4, kind: input, shape index: {}]
  %s5 = inlined_call_operand.hbm [shape: bf16[128,128], index: 5, kind: input, shape index: {}]
  %s6 = inlined_call_operand.vmem [shape: f32[1,128], index: 6, kind: input, shape index: {}]
  %s7 = inlined_call_operand.vmem [shape: f32[8,128], index: 7, kind: output, shape index: {}]
  %s8 = sld [smem:[#allocation0]]
  $region50: #{_mlp_forward.1} parent=0
    _
  %s10 = ssub.s32 1, %s8
  %s11 = scalar_select 0, %s10, %s8
  $region1: #{_mlp_forward.1} parent=0
    #allocation2 [shape = 'u8[32768]{0}', space=vmem, size = 0x8000, scoped, tag = 'input window, operand 1, single buffered']
    #allocation3 [shape = 's32[1]{0}', space=sflag, size = 0x4, scoped, tag = 'scoped memory for _mlp_forward.1']
    #allocation4 [shape = 'u8[32768]{0}', space=vmem, size = 0x8000, scoped, tag = 'input window, operand 3, single buffered']
    #allocation5 [shape = 's32[1]{0}', space=sflag, size = 0x4, scoped, tag = 'scoped memory for _mlp_forward.1']
    #allocation6 [shape = 'u8[32768]{0}', space=vmem, size = 0x8000, scoped, tag = 'input window, operand 5, single buffered']
    %12 = vsyncpa [#allocation3], 0
    %13 = vsyncpa [#allocation5], 0
    // Predicated region
    $region2: #{_mlp_forward.1} parent=1 // pred_check
      _
    $region3: #{_mlp_forward.1} parent=1 // pred_check_branch
      %15 = sbr.rel (0) target = $region5
    $region4: #{_mlp_forward.1} parent=1 // pred_region
      _
    $region5: #{_mlp_forward.1} parent=1 // pred_fallthru
      _
    // Predicated region
    $region6: #{_mlp_forward.1} parent=1 // pred_check
      _
    $region7: #{_mlp_forward.1} parent=1 // pred_check_branch
      %17 = sbr.rel (0) target = $region9
    $region8: #{_mlp_forward.1} parent=1 // pred_region
      %s19 = ssub.s32 1024, 1024
      %20 = vsyncadd [#allocation3], %s19
      %s21 = sshll.u32 [#allocation2], 4
      %s22 = int_to_ptr.vmem [resolvable:$true] %s21
      %27 = dma.hbm_to_vmem [thread:$0]  %s1, 1024, %s22, [#allocation3], 64, 64, 4
    $region9: #{_mlp_forward.1} parent=1 // pred_fallthru
      _
    // Predicated region
    $region10: #{_mlp_forward.1} parent=1 // pred_check
      _
    $region11: #{_mlp_forward.1} parent=1 // pred_check_branch
      %29 = sbr.rel (0) target = $region13
    $region12: #{_mlp_forward.1} parent=1 // pred_region
      _
    $region13: #{_mlp_forward.1} parent=1 // pred_fallthru
      _
    // Predicated region
    $region14: #{_mlp_forward.1} parent=1 // pred_check
      _
    $region15: #{_mlp_forward.1} parent=1 // pred_check_branch
      %31 = sbr.rel (0) target = $region17
    $region16: #{_mlp_forward.1} parent=1 // pred_region
      %s33 = ssub.s32 1024, 1024
      %34 = vsyncadd [#allocation5], %s33
      %s35 = sshll.u32 [#allocation4], 4
      %s36 = int_to_ptr.vmem [resolvable:$true] %s35
      %41 = dma.hbm_to_vmem [thread:$0]  %s3, 1024, %s36, [#allocation5], 64, 64, 4
    $region17: #{_mlp_forward.1} parent=1 // pred_fallthru
      _
    // Predicated region
    $region18: #{_mlp_forward.1} parent=1 // pred_check
      _
    $region19: #{_mlp_forward.1} parent=1 // pred_check_branch
      %43 = sbr.rel (0) target = $region21
    $region20: #{_mlp_forward.1} parent=1 // pred_region
      _
    $region21: #{_mlp_forward.1} parent=1 // pred_fallthru
      _
    // Predicated region
    $region22: #{_mlp_forward.1} parent=1 // pred_check
      _
    $region23: #{_mlp_forward.1} parent=1 // pred_check_branch
      %45 = sbr.rel (0) target = $region25
    $region24: #{_mlp_forward.1} parent=1 // pred_region
      %s47 = ssub.s32 1024, 1024
      %48 = vsyncadd [#allocation5], %s47
      %s49 = sshll.u32 [#allocation6], 4
      %s50 = int_to_ptr.vmem [resolvable:$true] %s49
      %55 = dma.hbm_to_vmem [thread:$0]  %s5, 1024, %s50, [#allocation5], 64, 64, 4
    $region25: #{_mlp_forward.1} parent=1 // pred_fallthru
      _
    // Predicated region
    $region26: #{_mlp_forward.1} parent=1 // pred_check
      _
    $region27: #{_mlp_forward.1} parent=1 // pred_check_branch
      %57 = sbr.rel (0) target = $region29
    $region28: #{_mlp_forward.1} parent=1 // pred_region
      _
    $region29: #{_mlp_forward.1} parent=1 // pred_fallthru
      _
    // Predicated region
    $region30: #{_mlp_forward.1} parent=1 // pred_check
      _
    $region31: #{_mlp_forward.1} parent=1 // pred_check_branch
      %59 = sbr.rel (0) target = $region33
    $region32: #{_mlp_forward.1} parent=1 // pred_region
      %60 = dma.done [#allocation3], 1024
    $region33: #{_mlp_forward.1} parent=1 // pred_fallthru
      _
    // Predicated region
    $region34: #{_mlp_forward.1} parent=1 // pred_check
      _
    $region35: #{_mlp_forward.1} parent=1 // pred_check_branch
      %62 = sbr.rel (0) target = $region37
    $region36: #{_mlp_forward.1} parent=1 // pred_region
      %63 = dma.done [#allocation5], 1024
    $region37: #{_mlp_forward.1} parent=1 // pred_fallthru
      _
    // Predicated region
    $region38: #{_mlp_forward.1} parent=1 // pred_check
      _
    $region39: #{_mlp_forward.1} parent=1 // pred_check_branch
      %65 = sbr.rel (0) target = $region41
    $region40: #{_mlp_forward.1} parent=1 // pred_region
      %66 = dma.done [#allocation5], 1024
    $region41: #{_mlp_forward.1} parent=1 // pred_fallthru
      _
    %v68 = vld [vmem:[%s0] sm:$0xff]
    %v69 = vld [vmem:[#allocation2] sm:$0xf]
    %v70 = vld [vmem:[#allocation2 + $0x4] sm:$0xf]
    %v71 = vld [vmem:[#allocation2 + $0x8] sm:$0xf]
    %v72 = vld [vmem:[#allocation2 + $0xc] sm:$0xf]
    %v73 = vld [vmem:[#allocation2 + $0x10] sm:$0xf]
    %v74 = vld [vmem:[#allocation2 + $0x14] sm:$0xf]
    %v75 = vld [vmem:[#allocation2 + $0x18] sm:$0xf]
    %v76 = vld [vmem:[#allocation2 + $0x1c] sm:$0xf]
    %v77 = vld [vmem:[#allocation2 + $0x20] sm:$0xf]
    %v78 = vld [vmem:[#allocation2 + $0x24] sm:$0xf]
    %v79 = vld [vmem:[#allocation2 + $0x28] sm:$0xf]
    %v80 = vld [vmem:[#allocation2 + $0x2c] sm:$0xf]
    %v81 = vld [vmem:[#allocation2 + $0x30] sm:$0xf]
    %v82 = vld [vmem:[#allocation2 + $0x34] sm:$0xf]
    %v83 = vld [vmem:[#allocation2 + $0x38] sm:$0xf]
    %v84 = vld [vmem:[#allocation2 + $0x3c] sm:$0xf]
    %v85 = vld [vmem:[%s2] sm:$0x1]
    %v86 = vpack.c.bf16 %v68, %v68
    %v88 = vlaneseq
    %v89 = vshrl.u32 %v88, 7
    %v90 = vsub.s32 0, %v89
    %v91 = vrot.slane %v85, %v90
    %v109 = vunpack.c.l.b16 %v69
    %v110 = vunpack.c.l.b16 %v70
    %v111 = vunpack.c.l.b16 %v71
    %v112 = vunpack.c.l.b16 %v72
    %v113 = vunpack.c.l.b16 %v73
    %v114 = vunpack.c.l.b16 %v74
    %v115 = vunpack.c.l.b16 %v75
    %v116 = vunpack.c.l.b16 %v76
    %v117 = vunpack.c.l.b16 %v77
    %v118 = vunpack.c.l.b16 %v78
    %v119 = vunpack.c.l.b16 %v79
    %v120 = vunpack.c.l.b16 %v80
    %v121 = vunpack.c.l.b16 %v81
    %v122 = vunpack.c.l.b16 %v82
    %v123 = vunpack.c.l.b16 %v83
    %v124 = vunpack.c.l.b16 %v84
    %v125 = vpack.c.b16 %v110, %v109
    %v126 = vpack.c.b16 %v112, %v111
    %v127 = vpack.c.b16 %v114, %v113
    %v128 = vpack.c.b16 %v116, %v115
    %v129 = vpack.c.b16 %v118, %v117
    %v130 = vpack.c.b16 %v120, %v119
    %v131 = vpack.c.b16 %v122, %v121
    %v132 = vpack.c.b16 %v124, %v123
    %141 = vmatprep.subr.bf16.mxu0 0
    %142 = vmatpush1.bf16.msra.mxu0 %v125
    %143 = vmatprep.subr.bf16.mxu0 0
    %144 = vmatpush1.bf16.msra.mxu0 %v126
    %145 = vmatprep.subr.bf16.mxu0 0
    %146 = vmatpush1.bf16.msra.mxu0 %v127
    %147 = vmatprep.subr.bf16.mxu0 0
    %148 = vmatpush1.bf16.msra.mxu0 %v128
    %149 = vmatprep.subr.bf16.mxu0 0
    %150 = vmatpush1.bf16.msra.mxu0 %v129
    %151 = vmatprep.subr.bf16.mxu0 0
    %152 = vmatpush1.bf16.msra.mxu0 %v130
    %153 = vmatprep.subr.bf16.mxu0 0
    %154 = vmatpush1.bf16.msra.mxu0 %v131
    %155 = vmatprep.subr.bf16.mxu0 0
    %156 = vmatpush1.bf16.msra.mxu0 %v132
    %157 = vmatprep.subr.bf16.mxu0 0
    %158 = vmatpush1.bf16.msra.mxu0 0
    %159 = vmatprep.subr.bf16.mxu0 0
    %160 = vmatpush1.bf16.msra.mxu0 0
    %161 = vmatprep.subr.bf16.mxu0 0
    %162 = vmatpush1.bf16.msra.mxu0 0
    %163 = vmatprep.subr.bf16.mxu0 0
    %164 = vmatpush1.bf16.msra.mxu0 0
    %165 = vmatprep.subr.bf16.mxu0 0
    %166 = vmatpush1.bf16.msra.mxu0 0
    %167 = vmatprep.subr.bf16.mxu0 0
    %168 = vmatpush1.bf16.msra.mxu0 0
    %169 = vmatprep.subr.bf16.mxu0 0
    %170 = vmatpush1.bf16.msra.mxu0 0
    %171 = vmatprep.subr.bf16.mxu0 0
    %172 = vmatpush1.bf16.msra.mxu0 0
    %173 = vmatprep.mubr.bf16.mxu0 0
    %174 = vmatmul.mubr.bf16.gmra.mrb[0].mxu0 %v86
    %v175 = vpop.f32.mrb[0].mxu0
    %v176 = vadd.f32 %v91, %v175
    %v177 = vpop.f32.mrb[0].mxu0
    %v178 = vpop.f32.mrb[0].mxu0
    %v179 = vpop.f32.mrb[0].mxu0
    %180 = vdwg.mxu0
    %v181 = vmul.f32 %v176, 0.5
    %v182 = vtanh.pop %v181
    %v183 = vmul.f32 %v182, 0.5
    %v184 = vadd.f32 %v183, 0.5
    %v185 = vld [vmem:[#allocation4] sm:$0xf]
    %v186 = vld [vmem:[#allocation4 + $0x4] sm:$0xf]
    %v187 = vld [vmem:[#allocation4 + $0x8] sm:$0xf]
    %v188 = vld [vmem:[#allocation4 + $0xc] sm:$0xf]
    %v189 = vld [vmem:[#allocation4 + $0x10] sm:$0xf]
    %v190 = vld [vmem:[#allocation4 + $0x14] sm:$0xf]
    %v191 = vld [vmem:[#allocation4 + $0x18] sm:$0xf]
    %v192 = vld [vmem:[#allocation4 + $0x1c] sm:$0xf]
    %v193 = vld [vmem:[#allocation4 + $0x20] sm:$0xf]
    %v194 = vld [vmem:[#allocation4 + $0x24] sm:$0xf]
    %v195 = vld [vmem:[#allocation4 + $0x28] sm:$0xf]
    %v196 = vld [vmem:[#allocation4 + $0x2c] sm:$0xf]
    %v197 = vld [vmem:[#allocation4 + $0x30] sm:$0xf]
    %v198 = vld [vmem:[#allocation4 + $0x34] sm:$0xf]
    %v199 = vld [vmem:[#allocation4 + $0x38] sm:$0xf]
    %v200 = vld [vmem:[#allocation4 + $0x3c] sm:$0xf]
    %v201 = vld [vmem:[%s4] sm:$0x1]
    %v202 = vpack.c.bf16 %v184, %v184
    %v204 = vlaneseq
    %v205 = vshrl.u32 %v204, 7
    %v206 = vsub.s32 0, %v205
    %v207 = vrot.slane %v201, %v206
    %v225 = vunpack.c.l.b16 %v185
    %v226 = vunpack.c.l.b16 %v186
    %v227 = vunpack.c.l.b16 %v187
    %v228 = vunpack.c.l.b16 %v188
    %v229 = vunpack.c.l.b16 %v189
    %v230 = vunpack.c.l.b16 %v190
    %v231 = vunpack.c.l.b16 %v191
    %v232 = vunpack.c.l.b16 %v192
    %v233 = vunpack.c.l.b16 %v193
    %v234 = vunpack.c.l.b16 %v194
    %v235 = vunpack.c.l.b16 %v195
    %v236 = vunpack.c.l.b16 %v196
    %v237 = vunpack.c.l.b16 %v197
    %v238 = vunpack.c.l.b16 %v198
    %v239 = vunpack.c.l.b16 %v199
    %v240 = vunpack.c.l.b16 %v200
    %v241 = vpack.c.b16 %v226, %v225
    %v242 = vpack.c.b16 %v228, %v227
    %v243 = vpack.c.b16 %v230, %v229
    %v244 = vpack.c.b16 %v232, %v231
    %v245 = vpack.c.b16 %v234, %v233
    %v246 = vpack.c.b16 %v236, %v235
    %v247 = vpack.c.b16 %v238, %v237
    %v248 = vpack.c.b16 %v240, %v239
    %257 = vmatprep.subr.bf16.mxu0 0
    %258 = vmatpush1.bf16.msra.mxu0 %v241
    %259 = vmatprep.subr.bf16.mxu0 0
    %260 = vmatpush1.bf16.msra.mxu0 %v242
    %261 = vmatprep.subr.bf16.mxu0 0
    %262 = vmatpush1.bf16.msra.mxu0 %v243
    %263 = vmatprep.subr.bf16.mxu0 0
    %264 = vmatpush1.bf16.msra.mxu0 %v244
    %265 = vmatprep.subr.bf16.mxu0 0
    %266 = vmatpush1.bf16.msra.mxu0 %v245
    %267 = vmatprep.subr.bf16.mxu0 0
    %268 = vmatpush1.bf16.msra.mxu0 %v246
    %269 = vmatprep.subr.bf16.mxu0 0
    %270 = vmatpush1.bf16.msra.mxu0 %v247
    %271 = vmatprep.subr.bf16.mxu0 0
    %272 = vmatpush1.bf16.msra.mxu0 %v248
    %273 = vmatprep.subr.bf16.mxu0 0
    %274 = vmatpush1.bf16.msra.mxu0 0
    %275 = vmatprep.subr.bf16.mxu0 0
    %276 = vmatpush1.bf16.msra.mxu0 0
    %277 = vmatprep.subr.bf16.mxu0 0
    %278 = vmatpush1.bf16.msra.mxu0 0
    %279 = vmatprep.subr.bf16.mxu0 0
    %280 = vmatpush1.bf16.msra.mxu0 0
    %281 = vmatprep.subr.bf16.mxu0 0
    %282 = vmatpush1.bf16.msra.mxu0 0
    %283 = vmatprep.subr.bf16.mxu0 0
    %284 = vmatpush1.bf16.msra.mxu0 0
    %285 = vmatprep.subr.bf16.mxu0 0
    %286 = vmatpush1.bf16.msra.mxu0 0
    %287 = vmatprep.subr.bf16.mxu0 0
    %288 = vmatpush1.bf16.msra.mxu0 0
    %289 = vmatprep.mubr.bf16.mxu0 0
    %290 = vmatmul.mubr.bf16.gmra.mrb[0].mxu0 %v202
    %v291 = vpop.f32.mrb[0].mxu0
    %v292 = vadd.f32 %v207, %v291
    %v293 = vpop.f32.mrb[0].mxu0
    %v294 = vpop.f32.mrb[0].mxu0
    %v295 = vpop.f32.mrb[0].mxu0
    %296 = vdwg.mxu0
    %v297 = vmul.f32 %v292, 0.5
    %v298 = vtanh.pop %v297
    %v299 = vmul.f32 %v298, 0.5
    %v300 = vadd.f32 %v299, 0.5
    %v301 = vld [vmem:[#allocation6] sm:$0xf]
    %v302 = vld [vmem:[#allocation6 + $0x4] sm:$0xf]
    %v303 = vld [vmem:[#allocation6 + $0x8] sm:$0xf]
    %v304 = vld [vmem:[#allocation6 + $0xc] sm:$0xf]
    %v305 = vld [vmem:[#allocation6 + $0x10] sm:$0xf]
    %v306 = vld [vmem:[#allocation6 + $0x14] sm:$0xf]
    %v307 = vld [vmem:[#allocation6 + $0x18] sm:$0xf]
    %v308 = vld [vmem:[#allocation6 + $0x1c] sm:$0xf]
    %v309 = vld [vmem:[#allocation6 + $0x20] sm:$0xf]
    %v310 = vld [vmem:[#allocation6 + $0x24] sm:$0xf]
    %v311 = vld [vmem:[#allocation6 + $0x28] sm:$0xf]
    %v312 = vld [vmem:[#allocation6 + $0x2c] sm:$0xf]
    %v313 = vld [vmem:[#allocation6 + $0x30] sm:$0xf]
    %v314 = vld [vmem:[#allocation6 + $0x34] sm:$0xf]
    %v315 = vld [vmem:[#allocation6 + $0x38] sm:$0xf]
    %v316 = vld [vmem:[#allocation6 + $0x3c] sm:$0xf]
    %v317 = vld [vmem:[%s6] sm:$0x1]
    %v318 = vpack.c.bf16 %v300, %v300
    %v320 = vlaneseq
    %v321 = vshrl.u32 %v320, 7
    %v322 = vsub.s32 0, %v321
    %v323 = vrot.slane %v317, %v322
    %v341 = vunpack.c.l.b16 %v301
    %v342 = vunpack.c.l.b16 %v302
    %v343 = vunpack.c.l.b16 %v303
    %v344 = vunpack.c.l.b16 %v304
    %v345 = vunpack.c.l.b16 %v305
    %v346 = vunpack.c.l.b16 %v306
    %v347 = vunpack.c.l.b16 %v307
    %v348 = vunpack.c.l.b16 %v308
    %v349 = vunpack.c.l.b16 %v309
    %v350 = vunpack.c.l.b16 %v310
    %v351 = vunpack.c.l.b16 %v311
    %v352 = vunpack.c.l.b16 %v312
    %v353 = vunpack.c.l.b16 %v313
    %v354 = vunpack.c.l.b16 %v314
    %v355 = vunpack.c.l.b16 %v315
    %v356 = vunpack.c.l.b16 %v316
    %v357 = vpack.c.b16 %v342, %v341
    %v358 = vpack.c.b16 %v344, %v343
    %v359 = vpack.c.b16 %v346, %v345
    %v360 = vpack.c.b16 %v348, %v347
    %v361 = vpack.c.b16 %v350, %v349
    %v362 = vpack.c.b16 %v352, %v351
    %v363 = vpack.c.b16 %v354, %v353
    %v364 = vpack.c.b16 %v356, %v355
    %373 = vmatprep.subr.bf16.mxu0 0
    %374 = vmatpush1.bf16.msra.mxu0 %v357
    %375 = vmatprep.subr.bf16.mxu0 0
    %376 = vmatpush1.bf16.msra.mxu0 %v358
    %377 = vmatprep.subr.bf16.mxu0 0
    %378 = vmatpush1.bf16.msra.mxu0 %v359
    %379 = vmatprep.subr.bf16.mxu0 0
    %380 = vmatpush1.bf16.msra.mxu0 %v360
    %381 = vmatprep.subr.bf16.mxu0 0
    %382 = vmatpush1.bf16.msra.mxu0 %v361
    %383 = vmatprep.subr.bf16.mxu0 0
    %384 = vmatpush1.bf16.msra.mxu0 %v362
    %385 = vmatprep.subr.bf16.mxu0 0
    %386 = vmatpush1.bf16.msra.mxu0 %v363
    %387 = vmatprep.subr.bf16.mxu0 0
    %388 = vmatpush1.bf16.msra.mxu0 %v364
    %389 = vmatprep.subr.bf16.mxu0 0
    %390 = vmatpush1.bf16.msra.mxu0 0
    %391 = vmatprep.subr.bf16.mxu0 0
    %392 = vmatpush1.bf16.msra.mxu0 0
    %393 = vmatprep.subr.bf16.mxu0 0
    %394 = vmatpush1.bf16.msra.mxu0 0
    %395 = vmatprep.subr.bf16.mxu0 0
    %396 = vmatpush1.bf16.msra.mxu0 0
    %397 = vmatprep.subr.bf16.mxu0 0
    %398 = vmatpush1.bf16.msra.mxu0 0
    %399 = vmatprep.subr.bf16.mxu0 0
    %400 = vmatpush1.bf16.msra.mxu0 0
    %401 = vmatprep.subr.bf16.mxu0 0
    %402 = vmatpush1.bf16.msra.mxu0 0
    %403 = vmatprep.subr.bf16.mxu0 0
    %404 = vmatpush1.bf16.msra.mxu0 0
    %405 = vmatprep.mubr.bf16.mxu0 0
    %406 = vmatmul.mubr.bf16.gmra.mrb[0].mxu0 %v318
    %v407 = vpop.f32.mrb[0].mxu0
    %v408 = vadd.f32 %v323, %v407
    %v409 = vpop.f32.mrb[0].mxu0
    %v410 = vpop.f32.mrb[0].mxu0
    %v411 = vpop.f32.mrb[0].mxu0
    %412 = vdwg.mxu0
    %v413 = vmul.f32 %v408, 0.5
    %v414 = vtanh.pop %v413
    %v415 = vmul.f32 %v414, 0.5
    %v416 = vadd.f32 %v415, 0.5
    %v417 = vmul.f32 %v416, 0.5
    %v418 = vtanh.pop %v417
    %v419 = vmul.f32 %v418, 0.5
    %v420 = vadd.f32 %v419, 0.5
    %421 = vst [vmem:[%s7] sm:$0xff] %v420
    // Predicated region
    $region42: #{_mlp_forward.1} parent=1 // pred_check
      _
    $region43: #{_mlp_forward.1} parent=1 // pred_check_branch
      %423 = sbr.rel (0) target = $region45
    $region44: #{_mlp_forward.1} parent=1 // pred_region
      _
    $region45: #{_mlp_forward.1} parent=1 // pred_fallthru
      _
    // Predicated region
    $region46: #{_mlp_forward.1} parent=1 // pred_check
      _
    $region47: #{_mlp_forward.1} parent=1 // pred_check_branch
      %425 = sbr.rel (0) target = $region49
    $region48: #{_mlp_forward.1} parent=1 // pred_region
      _
    $region49: #{_mlp_forward.1} parent=1 // pred_fallthru
      _
    %426 = vsyncpa [#allocation3], 1
    %427 = vsyncpa [#allocation5], 1

</llo_original>
